<compile_context>
chip_gen: v6e
topology: v6e:2x2x1
jax: 0.10.0
libtpu: 0.0.40
codegen_flags: <defaults>
</compile_context>

<pallas_src>
import functools

import jax
import jax.numpy as jnp
from jax import lax
from jax.experimental import pallas as pl
from jax.experimental.pallas import tpu as pltpu


def _lse_rows_kernel(x_ref, o_ref, m_sc, l_sc, *, c_total, mask_cols):
    """Streaming log-sum-exp over the class (lane) axis.

    x_ref : (TB, TC) logits tile (input dtype; cast to f32 in-register)
    o_ref : (TB, 1)  per-row logsumexp, written once at the last C step
    m_sc  : (TB, 1)  f32 running max
    l_sc  : (TB, 1)  f32 running sum
    """
    c = pl.program_id(1)
    last = pl.num_programs(1) - 1

    @pl.when(c == 0)
    def _init():
        m_sc[...] = jnp.full_like(m_sc, -jnp.inf)
        l_sc[...] = jnp.zeros_like(l_sc)

    x = x_ref[...].astype(jnp.float32)  # single dtype cast, in-register

    def _update(xt):
        tile_max = jnp.max(xt, axis=-1, keepdims=True)          # (TB, 1)
        m_new = jnp.maximum(m_sc[...], tile_max)
        alpha = jnp.exp(m_sc[...] - m_new)                       # == 0 on first step
        l_sc[...] = alpha * l_sc[...] + jnp.sum(
            jnp.exp(xt - m_new), axis=-1, keepdims=True)
        m_sc[...] = m_new

    if mask_cols:
        # Ragged C: pay for the iota/cmp/select mask only on the final C tile.
        @pl.when(c != last)
        def _update_unmasked():
            _update(x)

        @pl.when(c == last)
        def _update_masked():
            col = c * x.shape[1] + lax.broadcasted_iota(jnp.int32, x.shape, 1)
            _update(jnp.where(col < c_total, x, -jnp.inf))
    else:
        _update(x)

    @pl.when(c == last)
    def _finalize():
        o_ref[...] = m_sc[...] + jnp.log(l_sc[...])


def nce_softmax_loss_ns(x, *, max_tb=256, max_tc=8192,
                        vmem_limit_bytes=48 * 1024 * 1024):
    """JAX/Pallas equivalent of NCESoftmaxLossNS.forward(x)."""
    bsz = x.shape[0]
    logits = jnp.squeeze(x)                # mirror torch's .squeeze()
    if logits.ndim == 1:                   # degenerate bsz==1 case
        logits = logits[None, :]
    B, C = logits.shape
    assert B == bsz and C >= bsz, "labels arange(bsz) require num_classes >= bsz"

    # Diagonal handled entirely in the wrapper (B elements); the kernel only
    # produces per-row logsumexp.
    diag = jnp.diagonal(logits).astype(jnp.float32)    # (B,)

    # Tile sizes: full-extent when small, otherwise multiples of (8, 128).
    tb = B if B <= max_tb else max_tb
    # Megacore: guarantee >= 2 blocks along the "parallel" B axis when feasible
    # so both TensorCores are used on v7x (near no-op on 1-TC chips).
    if B >= 16 and pl.cdiv(B, tb) == 1:
        tb = ((-(-B // 2)) + 7) // 8 * 8               # round_up(ceil(B/2), 8)
    tc = C if C <= max_tc else max_tc
    grid = (pl.cdiv(B, tb), pl.cdiv(C, tc))
    mask_cols = (C % tc) != 0

    kernel = functools.partial(_lse_rows_kernel, c_total=C, mask_cols=mask_cols)

    lse = pl.pallas_call(
        kernel,
        out_shape=jax.ShapeDtypeStruct((B, 1), jnp.float32),
        grid_spec=pltpu.PrefetchScalarGridSpec(
            num_scalar_prefetch=0,
            grid=grid,
            in_specs=[
                pl.BlockSpec((tb, tc), lambda i, c: (i, c)),   # logits tile
            ],
            out_specs=pl.BlockSpec((tb, 1), lambda i, c: (i, 0)),
            scratch_shapes=[
                pltpu.VMEM((tb, 1), jnp.float32),              # running max m
                pltpu.VMEM((tb, 1), jnp.float32),              # running sum l
            ],
        ),
        compiler_params=pltpu.CompilerParams(
            # B axis parallel (2 TCs on v7x), C reduction axis arbitrary & last.
            dimension_semantics=("parallel", "arbitrary"),
            vmem_limit_bytes=vmem_limit_bytes,
        ),
    )(logits)

    # CrossEntropyLoss default reduction='mean'.
    return jnp.mean(lse[:, 0] - diag)


def _reference_loss(x):
    logits = jnp.squeeze(x).astype(jnp.float32)
    if logits.ndim == 1:
        logits = logits[None, :]
    bsz = logits.shape[0]
    logp = jax.nn.log_softmax(logits, axis=-1)
    return -jnp.mean(logp[jnp.arange(bsz), jnp.arange(bsz)])


if __name__ == "__main__":
    key = jax.random.PRNGKey(0)
    k1, k2, k3 = jax.random.split(key, 3)

    # 1) Canonical InfoNCE-NS input: (bsz, 1, bsz) similarity scores, f32.
    bsz = 8
    x1 = jax.random.normal(k1, (bsz, 1, bsz), dtype=jnp.float32)
    loss1 = nce_softmax_loss_ns(x1)
    jax.block_until_ready(loss1)
    ref1 = _reference_loss(x1)
    assert jnp.allclose(loss1, ref1, atol=1e-5, rtol=1e-5), (loss1, ref1)

    # 2) bf16 logits, multi-tile ragged C axis + megacore B split:
    #    B=16 -> tb=8 (grid 2 on the parallel axis), C=200 with tc=128 ->
    #    grid 2 on the reduction axis, mask applied only on the last C step.
    B2, C2 = 16, 200
    x2 = jax.random.normal(k2, (B2, 1, C2), dtype=jnp.float32).astype(jnp.bfloat16)
    loss2 = nce_softmax_loss_ns(x2, max_tc=128)
    jax.block_until_ready(loss2)
    ref2 = _reference_loss(x2)
    assert jnp.allclose(loss2, ref2, atol=1e-4, rtol=1e-4), (loss2, ref2)

    # 3) f32, ragged B block (B=24 -> tb=16, last block partial) and ragged C
    #    (C=384, tc=256): exercises discarded padded rows + masked final step.
    B3, C3 = 24, 384
    x3 = jax.random.normal(k3, (B3, 1, C3), dtype=jnp.float32)
    loss3 = nce_softmax_loss_ns(x3, max_tc=256)
    jax.block_until_ready(loss3)
    ref3 = _reference_loss(x3)
    assert jnp.allclose(loss3, ref3, atol=1e-5, rtol=1e-5), (loss3, ref3)

    print("KERNEL_OK")
</pallas_src>

<mosaic_0001>
module attributes {stable_mosaic.version = 11 : i64} {
  func.func @_lse_rows_kernel(%arg0: i32, %arg1: i32, %arg2: memref<8x8xf32, #tpu.memory_space<vmem>>, %arg3: memref<8x1xf32, #tpu.memory_space<vmem>>, %arg4: memref<8x1xf32, #tpu.memory_space<vmem>>, %arg5: memref<8x1xf32, #tpu.memory_space<vmem>>) attributes {dimension_semantics = [#tpu.dimension_semantics<parallel>, #tpu.dimension_semantics<arbitrary>], iteration_bounds = array<i64: 1, 1>, scalar_prefetch = 0 : i64, scratch_operands = 2 : i64, tpu.core_type = #tpu.core_type<tc>, window_params = [{transform_indices = @transform_0, window_bounds = array<i64: 8, 8>}, {transform_indices = @transform_1, window_bounds = array<i64: 8, 1>}]} {
    %c0_i32 = arith.constant 0 : i32
    %0 = arith.cmpi eq, %arg1, %c0_i32 : i32
    %1 = arith.extui %0 : i1 to i32
    %c0_i32_0 = arith.constant 0 : i32
    %2 = arith.cmpi ne, %1, %c0_i32_0 : i32
    scf.if %2 {
      %cst_15 = arith.constant 0xFF800000 : f32
      %24 = vector.broadcast %cst_15 : f32 to vector<8x1xf32>
      %c0_16 = arith.constant 0 : index
      %c0_17 = arith.constant 0 : index
      %25 = vector.load %arg4[%c0_16, %c0_17] : memref<8x1xf32, #tpu.memory_space<vmem>>, vector<8x1xf32>
      tpu.vector_store %arg4[%c0_16, %c0_17], %24 {strides = array<i32>} : memref<8x1xf32, #tpu.memory_space<vmem>>, vector<8x1xf32>,
      %cst_18 = arith.constant 0.000000e+00 : f32
      %26 = vector.broadcast %cst_18 : f32 to vector<8x1xf32>
      %c0_19 = arith.constant 0 : index
      %c0_20 = arith.constant 0 : index
      %27 = vector.load %arg5[%c0_19, %c0_20] : memref<8x1xf32, #tpu.memory_space<vmem>>, vector<8x1xf32>
      tpu.vector_store %arg5[%c0_19, %c0_20], %26 {strides = array<i32>} : memref<8x1xf32, #tpu.memory_space<vmem>>, vector<8x1xf32>,
    } else {
    }
    %c0 = arith.constant 0 : index
    %c0_1 = arith.constant 0 : index
    %3 = vector.load %arg2[%c0, %c0_1] : memref<8x8xf32, #tpu.memory_space<vmem>>, vector<8x8xf32>
    %cst = arith.constant dense<0xFF800000> : vector<8xf32>
    %4 = vector.multi_reduction <maximumf>, %3, %cst [1] : vector<8x8xf32> to vector<8xf32>
    %5 = vector.shape_cast %4 : vector<8xf32> to vector<8x1xf32>
    %c0_2 = arith.constant 0 : index
    %c0_3 = arith.constant 0 : index
    %6 = vector.load %arg4[%c0_2, %c0_3] : memref<8x1xf32, #tpu.memory_space<vmem>>, vector<8x1xf32>
    %7 = arith.maximumf %6, %5 : vector<8x1xf32>
    %c0_4 = arith.constant 0 : index
    %c0_5 = arith.constant 0 : index
    %8 = vector.load %arg4[%c0_4, %c0_5] : memref<8x1xf32, #tpu.memory_space<vmem>>, vector<8x1xf32>
    %9 = arith.subf %8, %7 : vector<8x1xf32>
    %10 = math.exp %9 : vector<8x1xf32>
    %c0_6 = arith.constant 0 : index
    %c0_7 = arith.constant 0 : index
    %11 = vector.load %arg5[%c0_6, %c0_7] : memref<8x1xf32, #tpu.memory_space<vmem>>, vector<8x1xf32>
    %12 = arith.mulf %10, %11 : vector<8x1xf32>
    %13 = vector.broadcast %7 : vector<8x1xf32> to vector<8x8xf32>
    %14 = arith.subf %3, %13 : vector<8x8xf32>
    %15 = math.exp %14 : vector<8x8xf32>
    %cst_8 = arith.constant dense<0.000000e+00> : vector<8xf32>
    %16 = vector.multi_reduction <add>, %15, %cst_8 [1] : vector<8x8xf32> to vector<8xf32>
    %17 = vector.shape_cast %16 : vector<8xf32> to vector<8x1xf32>
    %18 = arith.addf %12, %17 : vector<8x1xf32>
    %c0_9 = arith.constant 0 : index
    %c0_10 = arith.constant 0 : index
    %19 = vector.load %arg5[%c0_9, %c0_10] : memref<8x1xf32, #tpu.memory_space<vmem>>, vector<8x1xf32>
    tpu.vector_store %arg5[%c0_9, %c0_10], %18 {strides = array<i32>} : memref<8x1xf32, #tpu.memory_space<vmem>>, vector<8x1xf32>,
    %c0_11 = arith.constant 0 : index
    %c0_12 = arith.constant 0 : index
    %20 = vector.load %arg4[%c0_11, %c0_12] : memref<8x1xf32, #tpu.memory_space<vmem>>, vector<8x1xf32>
    tpu.vector_store %arg4[%c0_11, %c0_12], %7 {strides = array<i32>} : memref<8x1xf32, #tpu.memory_space<vmem>>, vector<8x1xf32>,
    %c0_i32_13 = arith.constant 0 : i32
    %21 = arith.cmpi eq, %arg1, %c0_i32_13 : i32
    %22 = arith.extui %21 : i1 to i32
    %c0_i32_14 = arith.constant 0 : i32
    %23 = arith.cmpi ne, %22, %c0_i32_14 : i32
    scf.if %23 {
      %c0_15 = arith.constant 0 : index
      %c0_16 = arith.constant 0 : index
      %24 = vector.load %arg4[%c0_15, %c0_16] : memref<8x1xf32, #tpu.memory_space<vmem>>, vector<8x1xf32>
      %c0_17 = arith.constant 0 : index
      %c0_18 = arith.constant 0 : index
      %25 = vector.load %arg5[%c0_17, %c0_18] : memref<8x1xf32, #tpu.memory_space<vmem>>, vector<8x1xf32>
      %26 = math.log %25 : vector<8x1xf32>
      %27 = arith.addf %24, %26 : vector<8x1xf32>
      %c0_19 = arith.constant 0 : index
      %c0_20 = arith.constant 0 : index
      %28 = vector.load %arg3[%c0_19, %c0_20] : memref<8x1xf32, #tpu.memory_space<vmem>>, vector<8x1xf32>
      tpu.vector_store %arg3[%c0_19, %c0_20], %27 {strides = array<i32>} : memref<8x1xf32, #tpu.memory_space<vmem>>, vector<8x1xf32>,
    } else {
    }
    return
  }
  func.func @transform_0(%arg0: i32, %arg1: i32) -> (i32, i32) {
    %c0_i32 = arith.constant 0 : i32
    return %arg0, %arg1 : i32, i32
  }
  func.func @transform_1(%arg0: i32, %arg1: i32) -> (i32, i32) {
    %c0_i32 = arith.constant 0 : i32
    %c0_i32_0 = arith.constant 0 : i32
    return %arg0, %c0_i32 : i32, i32
  }
}

</mosaic_0001>

<llo_original>
// kernel: tpu_custom_call.1
$region0: #{tpu_custom_call.1}
  #allocation0 [shape = 'u32[]', space=smem, size = 0x4, offset = 0x4, fixed_abs, tag = 'smem constant byte address 0x4 - core index']
  #allocation1 [shape = 'u32[144,128]{1,0:T(1,128)}', space=vmem, size = 0x12000, scoped, tag = 'internal scratch']
  #allocation2 [shape = 'f32[8,1]{1,0:T(8,128)}', space=vmem, size = 0x1000, scoped, tag = 'scratch operand']
  #allocation3 [shape = 'f32[8,1]{1,0:T(8,128)}', space=vmem, size = 0x1000, scoped, tag = 'scratch operand']
  %s0 = inlined_call_operand.hbm [shape: f32[8,8], index: 0, kind: input, shape index: {}]
  %s1 = inlined_call_operand.vmem [shape: f32[8,1], index: 1, kind: output, shape index: {}]
  %s2 = sld [smem:[#allocation0]]
  $region26: #{tpu_custom_call.1} parent=0
    _
  %s4 = ssub.s32 1, %s2
  %s5 = scalar_select 0, %s4, %s2
  $region1: #{tpu_custom_call.1} parent=0
    #allocation4 [shape = 'u8[4096]{0}', space=vmem, size = 0x1000, scoped, tag = 'input window, operand 0, single buffered']
    #allocation5 [shape = 's32[1]{0}', space=sflag, size = 0x4, scoped, tag = 'scoped memory for tpu_custom_call.1']
    %6 = vsyncpa [#allocation5], 0
    // Predicated region
    $region2: #{tpu_custom_call.1} parent=1 // pred_check
      _
    $region3: #{tpu_custom_call.1} parent=1 // pred_check_branch
      %8 = sbr.rel (0) target = $region5
    $region4: #{tpu_custom_call.1} parent=1 // pred_region
      %s10 = ssub.s32 128, 128
      %11 = vsyncadd [#allocation5], %s10
      %s13 = sshll.u32 [#allocation4], 4
      %s14 = int_to_ptr.vmem [resolvable:$true] %s13
      %16 = dma.hbm_to_vmem [thread:$0]  %s0, 128, %s14, [#allocation5]
    $region5: #{tpu_custom_call.1} parent=1 // pred_fallthru
      _
    // Predicated region
    $region6: #{tpu_custom_call.1} parent=1 // pred_check
      _
    $region7: #{tpu_custom_call.1} parent=1 // pred_check_branch
      %18 = sbr.rel (0) target = $region9
    $region8: #{tpu_custom_call.1} parent=1 // pred_region
      %19 = dma.done [#allocation5], 128
    $region9: #{tpu_custom_call.1} parent=1 // pred_fallthru
      _
    %p20 = scmp.eq.s32.totalorder 0, 0
    // Predicated region
    $region10: #{tpu_custom_call.1} parent=1 // pred_check
      %p21 = pneg %p20
    $region11: #{tpu_custom_call.1} parent=1 // pred_check_branch
      %23 = sbr.rel (%p21) target = $region13
    $region12: #{tpu_custom_call.1} parent=1 // pred_region
      %vm24 = vcmask 7168
      %25 = vst.msk [vmem:[#allocation2] sm:$0xff] %vm24, -inf
      %26 = vst.msk [vmem:[#allocation3] sm:$0xff] %vm24, 0.0
    $region13: #{tpu_custom_call.1} parent=1 // pred_fallthru
      _
    %v27 = vld [vmem:[#allocation4] sm:$0xff]
    %vm28 = vcmask 64512
    %v29 = vsel %vm28, %v27, -inf
    %30 = vmax.xlane.f32.xlu0 %v29
    %v31 = vpop.xlane.xlu0 %30
    %v32 = vld [vmem:[#allocation2] sm:$0xff]
    %v33 = vmax.f32 %v32, %v31
    %v34 = vsub.f32 %v32, %v33
    %v35 = vmul.f32 %v34, 1.442695
    %v36 = vpow.pop %v35
    %v37 = vld [vmem:[#allocation3] sm:$0xff]
    %v38 = vmul.f32 %v36, %v37
    %40 = vset.pattern.permute.xlu0 0
    %41 = vperm.xlu0 %40, %v33
    %v42 = vpop.permute.xlu0 %41
    %v44 = vsub.f32 %v27, %v42
    %v45 = vmul.f32 %v44, 1.442695
    %v46 = vpow.pop %v45
    %v47 = vsel %vm28, %v46, 0.0
    %48 = vadd.xlane.f32.xlu0 %v47
    %v49 = vpop.xlane.xlu0 %48
    %v50 = vadd.f32 %v38, %v49
    %vm51 = vcmask 7168
    %52 = vst.msk [vmem:[#allocation3] sm:$0xff] %vm51, %v50
    %53 = vst.msk [vmem:[#allocation2] sm:$0xff] %vm51, %v33
    // Predicated region
    $region14: #{tpu_custom_call.1} parent=1 // pred_check
      %p54 = pneg %p20
    $region15: #{tpu_custom_call.1} parent=1 // pred_check_branch
      %56 = sbr.rel (%p54) target = $region17
    $region16: #{tpu_custom_call.1} parent=1 // pred_region
      %v57 = vld [vmem:[#allocation2] sm:$0xff]
      %v58 = vld [vmem:[#allocation3] sm:$0xff]
      %v59 = vlog2.pop %v58
      %v60 = vmul.f32 %v59, 0.6931472
      %v61 = vadd.f32 %v57, %v60
      %62 = vst.msk [vmem:[%s1] sm:$0xff] %vm51, %v61
    $region17: #{tpu_custom_call.1} parent=1 // pred_fallthru
      _
    // Predicated region
    $region18: #{tpu_custom_call.1} parent=1 // pred_check
      _
    $region19: #{tpu_custom_call.1} parent=1 // pred_check_branch
      %64 = sbr.rel (0) target = $region21
    $region20: #{tpu_custom_call.1} parent=1 // pred_region
      _
    $region21: #{tpu_custom_call.1} parent=1 // pred_fallthru
      _
    // Predicated region
    $region22: #{tpu_custom_call.1} parent=1 // pred_check
      _
    $region23: #{tpu_custom_call.1} parent=1 // pred_check_branch
      %66 = sbr.rel (0) target = $region25
    $region24: #{tpu_custom_call.1} parent=1 // pred_region
      _
    $region25: #{tpu_custom_call.1} parent=1 // pred_fallthru
      _
    %67 = vsyncpa [#allocation5], 1

</llo_original>
